<compile_context>
chip_gen: v7x
topology: tpu7x:2x2x1
jax: 0.10.0
libtpu: 0.0.40
codegen_flags: <defaults>
</compile_context>

<pallas_src>
import functools

import jax
import jax.numpy as jnp
from jax.experimental import pallas as pl
from jax.experimental.pallas import tpu as pltpu


def _round_up(a, b):
    return (a + b - 1) // b * b


def _chip_info():
    """Best-effort (device kind, VMEM capacity in bytes)."""
    kind = ""
    try:
        kind = jax.devices()[0].device_kind.lower()
    except Exception:
        pass
    vmem_cap = None
    try:
        vmem_cap = int(getattr(pltpu.get_tpu_info(), "vmem_capacity_bytes"))
    except Exception:
        vmem_cap = None
    if not vmem_cap or vmem_cap <= 0:
        if "v7" in kind:
            vmem_cap = 64 * 1024 * 1024
        elif ("v5" in kind) or ("v6" in kind) or ("trillium" in kind):
            vmem_cap = 128 * 1024 * 1024
        else:
            vmem_cap = 64 * 1024 * 1024       # conservative default
    return kind, vmem_cap


def _res_swiglu_kernel(x_ref, gamma_ref, beta_ref, w1_ref, b1_ref, w2_ref,
                       b2_ref, o_ref, acc_ref, h_ref, *, d_in, th, eps,
                       ew_dtype):
    k = pl.program_id(1)

    @pl.when(k == 0)
    def _init():
        # LayerNorm over the true (unpadded) feature dim, computed once per
        # row tile and cached for all hidden-dim steps.
        x = x_ref[...].astype(jnp.float32)                     # (tm, d_in_p)
        d_in_p = x.shape[-1]
        inv_n = 1.0 / d_in
        mean = jnp.sum(x, axis=-1, keepdims=True) * inv_n      # pads are zero
        xc = x - mean
        if d_in_p != d_in:                                     # mask padded lanes
            lane = jax.lax.broadcasted_iota(jnp.int32, x.shape, 1)
            xc = jnp.where(lane < d_in, xc, 0.0)
        var = jnp.sum(xc * xc, axis=-1, keepdims=True) * inv_n
        h = xc * jax.lax.rsqrt(var + eps) * gamma_ref[...] + beta_ref[...]
        h_ref[...] = h.astype(h_ref.dtype)
        # Fold residual + second-Linear bias into the accumulator init so the
        # epilogue is a plain cast-and-store.
        acc_ref[...] = x + b2_ref[...]

    h = h_ref[...]                                             # (tm, d_in_p)

    # Fused [gate | value] projection for this hidden tile (single MXU pass,
    # f32 accumulation), then SwiGLU in ew_dtype (bf16 on v6e/v7x).
    y = jnp.dot(h, w1_ref[...], preferred_element_type=jnp.float32) + b1_ref[...]
    y_g = y[:, :th].astype(ew_dtype)
    y_v = y[:, th:].astype(ew_dtype)
    s_g = y_g * jax.nn.sigmoid(y_g)          # SiLU (gate half)
    s_v = y_v * jax.nn.sigmoid(y_v)          # SiLU (value half)
    g = s_g * jax.nn.sigmoid(s_v)            # GLU(dim=-1)
    # TODO(synk): training-mode dropout (stateful PRNG mask) not implemented;
    # kernel matches eval-mode semantics only.

    # Partial second matmul for this hidden tile, accumulated in f32
    # (single statement so the MXU result buffer can absorb the accumulate).
    acc_ref[...] += jnp.dot(g.astype(w2_ref.dtype), w2_ref[...],
                            preferred_element_type=jnp.float32)

    @pl.when(k == pl.num_programs(1) - 1)
    def _finish():
        o_ref[...] = acc_ref[...].astype(o_ref.dtype)


def res_swiglu(x, gamma, beta, w1, b1, w2, b2, *, eps=1e-5, tm=None, th=None,
               compute_dtype=jnp.bfloat16):
    """Fused residual SwiGLU block.

    x: (B, S, d_in).
    w1: (d_in, 2*d_hid) (pre-transposed Linear weight), b1: (2*d_hid,)
    w2: (d_hid, d_in)   (pre-transposed Linear weight), b2: (d_in,)
    tm / th: optional row / hidden tile overrides (None -> auto solver).
    """
    B, S, d_in = x.shape
    d_hid = w1.shape[1] // 2
    assert w1.shape == (d_in, 2 * d_hid) and w2.shape == (d_hid, d_in)
    assert b1.shape == (2 * d_hid,) and b2.shape == (d_in,)
    N = B * S

    kind, vmem_cap = _chip_info()
    is_v5 = "v5" in kind
    is_v6 = ("v6" in kind) or ("trillium" in kind)
    is_v7 = "v7" in kind

    cd = jnp.dtype(compute_dtype)
    # Elementwise SwiGLU dtype: bf16 only where the VPU/EUP are bf16-capable.
    ew_dtype = jnp.float32 if (is_v5 or cd.itemsize >= 4) else compute_dtype
    wb = cd.itemsize
    ewb = jnp.dtype(ew_dtype).itemsize

    # --- feature / hidden alignment (256 for the 2x256x256 MXUs, when the dim
    #     is large enough that the extra padding is negligible) ---
    mxu = 128 if is_v5 else 256
    align_in = mxu if d_in >= 512 else 128
    align_h = mxu if d_hid >= 512 else 128
    d_in_p = _round_up(d_in, align_in)
    d_hid_a = _round_up(d_hid, align_h)

    def footprint(tm_, th_):
        f = 0
        f += 2 * tm_ * d_in_p * 4               # x blocks (double-buffered)
        f += 2 * tm_ * d_in_p * 4               # output blocks
        f += 2 * d_in_p * (2 * th_) * wb        # packed [W1g|W1v] tiles
        f += 2 * th_ * d_in_p * wb              # W2 tiles
        f += 2 * 2 * th_ * 4 + 6 * d_in_p * 4   # biases / gamma / beta
        f += tm_ * d_in_p * 4                   # f32 accumulator scratch
        f += tm_ * d_in_p * wb                  # cached LayerNorm output
        f += 2 * tm_ * 2 * th_ * 4              # y (f32) + slices
        f += 3 * tm_ * 2 * th_ * ewb            # SiLU / GLU intermediates
        return f

    budget = int(0.70 * vmem_cap)

    # --- row tile: large enough to clear the weight-streaming roofline
    #     crossover for this chip generation; budget may shrink it below. ---
    if tm is None:
        tm = 384 if is_v5 else (768 if is_v6 else 512)
        tm = min(tm, _round_up(N, 8))
        if is_v7 and N >= 16:                   # keep both TensorCores busy
            tm = min(tm, _round_up((N + 1) // 2, 8))
    else:
        tm = max(8, min(_round_up(tm, 8), _round_up(N, 8)))
    tm = max(8, tm)

    # --- hidden tile: largest th (ideally the whole hidden dim -> resident
    #     weights, no re-streaming per row tile) fitting the VMEM budget. ---
    if th is None:
        cands = [d_hid_a] + [c for c in (2048, 1024, 512, 256, 128)
                             if c < d_hid_a and c % align_h == 0]
        th = None
        for cand in cands:
            if footprint(tm, cand) <= budget:
                th = cand
                break
        if th is None:
            th = align_h
            while footprint(tm, th) > budget and tm > 128:
                tm = max(128, _round_up(tm // 2, 8))
    else:
        th = max(128, min(_round_up(th, 128), d_hid_a))

    d_hid_p = _round_up(d_hid, th)
    N_p = _round_up(N, tm)
    n_rows = N_p // tm
    n_h = d_hid_p // th

    f32 = jnp.float32
    x2 = jnp.pad(x.reshape(N, d_in), ((0, N_p - N), (0, d_in_p - d_in)))
    gamma_p = jnp.pad(gamma.astype(f32), (0, d_in_p - d_in)).reshape(1, d_in_p)
    beta_p = jnp.pad(beta.astype(f32), (0, d_in_p - d_in)).reshape(1, d_in_p)

    # W1 split into gate / value halves, padded, and re-packed so hidden tile k
    # is the contiguous slab [gate_k | value_k] -> one fused MXU pass per step.
    w1g = jnp.pad(w1[:, :d_hid], ((0, d_in_p - d_in), (0, d_hid_p - d_hid)))
    w1v = jnp.pad(w1[:, d_hid:], ((0, d_in_p - d_in), (0, d_hid_p - d_hid)))
    w1_packed = jnp.concatenate(
        [w1g.reshape(d_in_p, n_h, th), w1v.reshape(d_in_p, n_h, th)], axis=-1
    ).reshape(d_in_p, n_h * 2 * th).astype(compute_dtype)

    b1g = jnp.pad(b1[:d_hid].astype(f32), (0, d_hid_p - d_hid)).reshape(n_h, th)
    b1v = jnp.pad(b1[d_hid:].astype(f32), (0, d_hid_p - d_hid)).reshape(n_h, th)
    b1_packed = jnp.concatenate([b1g, b1v], axis=-1).reshape(1, n_h * 2 * th)

    w2_p = jnp.pad(w2, ((0, d_hid_p - d_hid), (0, d_in_p - d_in))).astype(compute_dtype)
    b2_p = jnp.pad(b2.astype(f32), (0, d_in_p - d_in)).reshape(1, d_in_p)

    # --- VMEM limit: tiles were sized against ~0.70x capacity; hand Mosaic a
    #     generous (but sub-physical) scoped limit so it never clamps below
    #     what the tiles actually need. ---
    fp = footprint(tm, th)
    vmem_limit = int(min(int(0.92 * vmem_cap),
                         max(int(1.3 * fp), 64 * 1024 * 1024)))
    vmem_limit = max(vmem_limit, min(vmem_cap, int(1.1 * fp)))

    kernel = functools.partial(_res_swiglu_kernel, d_in=d_in, th=th, eps=eps,
                               ew_dtype=ew_dtype)

    out = pl.pallas_call(
        kernel,
        out_shape=jax.ShapeDtypeStruct((N_p, d_in_p), x.dtype),
        grid_spec=pltpu.PrefetchScalarGridSpec(
            num_scalar_prefetch=0,
            grid=(n_rows, n_h),                                  # rows, hidden
            in_specs=[
                pl.BlockSpec((tm, d_in_p), lambda i, k: (i, 0)),      # x rows
                pl.BlockSpec((1, d_in_p), lambda i, k: (0, 0)),       # gamma
                pl.BlockSpec((1, d_in_p), lambda i, k: (0, 0)),       # beta
                pl.BlockSpec((d_in_p, 2 * th), lambda i, k: (0, k)),  # [W1g|W1v]
                pl.BlockSpec((1, 2 * th), lambda i, k: (0, k)),       # [b1g|b1v]
                pl.BlockSpec((th, d_in_p), lambda i, k: (k, 0)),      # W2 tile
                pl.BlockSpec((1, d_in_p), lambda i, k: (0, 0)),       # b2
            ],
            out_specs=pl.BlockSpec((tm, d_in_p), lambda i, k: (i, 0)),
            scratch_shapes=[pltpu.VMEM((tm, d_in_p), jnp.float32),    # f32 acc
                            pltpu.VMEM((tm, d_in_p), compute_dtype)], # LN cache
        ),
        compiler_params=pltpu.CompilerParams(
            dimension_semantics=("parallel", "arbitrary"),
            vmem_limit_bytes=vmem_limit),
    )(x2, gamma_p, beta_p, w1_packed, b1_packed, w2_p, b2_p)

    return out[:N, :d_in].reshape(B, S, d_in)


def _reference(x, gamma, beta, w1, b1, w2, b2, eps=1e-5):
    hp = jax.lax.Precision.HIGHEST
    mean = jnp.mean(x, axis=-1, keepdims=True)
    var = jnp.mean((x - mean) ** 2, axis=-1, keepdims=True)
    h = (x - mean) * jax.lax.rsqrt(var + eps) * gamma + beta
    y = jnp.dot(h, w1, precision=hp) + b1
    s = y * jax.nn.sigmoid(y)
    d_hid = w2.shape[0]
    g = s[..., :d_hid] * jax.nn.sigmoid(s[..., d_hid:])
    return x + jnp.dot(g, w2, precision=hp) + b2


if __name__ == "__main__":
    key = jax.random.PRNGKey(0)

    def make_params(k, d_in, expansion):
        d_hid = d_in * expansion
        kg, kb, kw1, kb1, kw2, kb2 = jax.random.split(k, 6)
        gamma = 1.0 + 0.1 * jax.random.normal(kg, (d_in,), jnp.float32)
        beta = 0.1 * jax.random.normal(kb, (d_in,), jnp.float32)
        # Pre-transposed Linear weights (PyTorch stores (out, in); we use (in, out)).
        w1 = jax.random.normal(kw1, (d_in, 2 * d_hid), jnp.float32) * (d_in ** -0.5)
        b1 = 0.01 * jax.random.normal(kb1, (2 * d_hid,), jnp.float32)
        w2 = jax.random.normal(kw2, (d_hid, d_in), jnp.float32) * (d_hid ** -0.5)
        b2 = 0.01 * jax.random.normal(kb2, (d_in,), jnp.float32)
        return gamma, beta, w1, b1, w2, b2

    k1, k2, kx1, kx2 = jax.random.split(key, 4)

    # Config 1: module-spec toy size (d_in=32, expansion=4), auto tiling
    # (resident-weight path, feature dim padded 32 -> 128).
    B, S, d_in = 2, 8, 32
    params1 = make_params(k1, d_in, 4)
    x1 = jax.random.normal(kx1, (B, S, d_in), jnp.float32)
    ref1 = _reference(x1, *params1)
    out1_f32 = jax.block_until_ready(
        res_swiglu(x1, *params1, compute_dtype=jnp.float32))
    out1_bf16 = jax.block_until_ready(res_swiglu(x1, *params1))
    assert out1_f32.shape == x1.shape
    assert jnp.allclose(out1_f32, ref1, atol=5e-4, rtol=5e-4)
    assert jnp.allclose(out1_bf16, ref1, atol=5e-2, rtol=5e-2)

    # Config 2: forced small tiles -> exercises row padding (48 -> 64 rows),
    # multi-step hidden accumulation (4 hidden tiles) and the packed W1 layout.
    B2, S2, d_in2 = 2, 24, 128
    params2 = make_params(k2, d_in2, 4)
    x2 = jax.random.normal(kx2, (B2, S2, d_in2), jnp.float32)
    ref2 = _reference(x2, *params2)
    out2_f32 = jax.block_until_ready(
        res_swiglu(x2, *params2, tm=32, th=128, compute_dtype=jnp.float32))
    out2_bf16 = jax.block_until_ready(
        res_swiglu(x2, *params2, tm=32, th=128))
    assert out2_f32.shape == x2.shape
    assert jnp.allclose(out2_f32, ref2, atol=5e-4, rtol=5e-4)
    assert jnp.allclose(out2_bf16, ref2, atol=5e-2, rtol=5e-2)

    print("KERNEL_OK")
</pallas_src>

<mosaic_0001>
module attributes {stable_mosaic.version = 11 : i64} {
  func.func @_res_swiglu_kernel(%arg0: i32, %arg1: i32, %arg2: memref<16x128xf32, #tpu.memory_space<vmem>>, %arg3: memref<1x128xf32, #tpu.memory_space<vmem>>, %arg4: memref<1x128xf32, #tpu.memory_space<vmem>>, %arg5: memref<128x256xf32, #tpu.memory_space<vmem>>, %arg6: memref<1x256xf32, #tpu.memory_space<vmem>>, %arg7: memref<128x128xf32, #tpu.memory_space<vmem>>, %arg8: memref<1x128xf32, #tpu.memory_space<vmem>>, %arg9: memref<16x128xf32, #tpu.memory_space<vmem>>, %arg10: memref<16x128xf32, #tpu.memory_space<vmem>>, %arg11: memref<16x128xf32, #tpu.memory_space<vmem>>) attributes {dimension_semantics = [#tpu.dimension_semantics<parallel>, #tpu.dimension_semantics<arbitrary>], iteration_bounds = array<i64: 1, 1>, scalar_prefetch = 0 : i64, scratch_operands = 2 : i64, tpu.core_type = #tpu.core_type<tc>, window_params = [{transform_indices = @transform_0, window_bounds = array<i64: 16, 128>}, {pipeline_mode = #tpu.pipeline_mode<synchronous>, transform_indices = @transform_1, window_bounds = array<i64: 1, 128>}, {pipeline_mode = #tpu.pipeline_mode<synchronous>, transform_indices = @transform_2, window_bounds = array<i64: 1, 128>}, {transform_indices = @transform_3, window_bounds = array<i64: 128, 256>}, {transform_indices = @transform_4, window_bounds = array<i64: 1, 256>}, {transform_indices = @transform_5, window_bounds = array<i64: 128, 128>}, {pipeline_mode = #tpu.pipeline_mode<synchronous>, transform_indices = @transform_6, window_bounds = array<i64: 1, 128>}, {transform_indices = @transform_7, window_bounds = array<i64: 16, 128>}]} {
    %c0_i32 = arith.constant 0 : i32
    %0 = arith.cmpi eq, %arg1, %c0_i32 : i32
    %1 = arith.extui %0 : i1 to i32
    %c0_i32_0 = arith.constant 0 : i32
    %2 = arith.cmpi ne, %1, %c0_i32_0 : i32
    scf.if %2 {
      %c0_18 = arith.constant 0 : index
      %c0_19 = arith.constant 0 : index
      %37 = vector.load %arg2[%c0_18, %c0_19] : memref<16x128xf32, #tpu.memory_space<vmem>>, vector<16x128xf32>
      %cst_20 = arith.constant dense<0.000000e+00> : vector<16xf32>
      %38 = vector.multi_reduction <add>, %37, %cst_20 [1] : vector<16x128xf32> to vector<16xf32>
      %39 = vector.shape_cast %38 : vector<16xf32> to vector<16x1xf32>
      %cst_21 = arith.constant 3.125000e-02 : f32
      %40 = vector.broadcast %cst_21 : f32 to vector<16x1xf32>
      %41 = arith.mulf %39, %40 : vector<16x1xf32>
      %42 = vector.broadcast %41 : vector<16x1xf32> to vector<16x128xf32>
      %43 = arith.subf %37, %42 : vector<16x128xf32>
      %44 = tpu.iota {dimensions = array<i32: 1>} : vector<16x128xi32>
      %c32_i32 = arith.constant 32 : i32
      %45 = vector.broadcast %c32_i32 : i32 to vector<16x128xi32>
      %46 = arith.cmpi slt, %44, %45 : vector<16x128xi32>
      %cst_22 = arith.constant 0.000000e+00 : f32
      %47 = vector.broadcast %cst_22 : f32 to vector<16x128xf32>
      %48 = arith.select %46, %43, %47 : vector<16x128xi1>, vector<16x128xf32>
      %49 = arith.mulf %48, %48 : vector<16x128xf32>
      %cst_23 = arith.constant dense<0.000000e+00> : vector<16xf32>
      %50 = vector.multi_reduction <add>, %49, %cst_23 [1] : vector<16x128xf32> to vector<16xf32>
      %51 = vector.shape_cast %50 : vector<16xf32> to vector<16x1xf32>
      %cst_24 = arith.constant 3.125000e-02 : f32
      %52 = vector.broadcast %cst_24 : f32 to vector<16x1xf32>
      %53 = arith.mulf %51, %52 : vector<16x1xf32>
      %cst_25 = arith.constant 9.99999974E-6 : f32
      %54 = vector.broadcast %cst_25 : f32 to vector<16x1xf32>
      %55 = arith.addf %53, %54 : vector<16x1xf32>
      %56 = math.rsqrt %55 : vector<16x1xf32>
      %57 = vector.broadcast %56 : vector<16x1xf32> to vector<16x128xf32>
      %58 = arith.mulf %48, %57 : vector<16x128xf32>
      %c0_26 = arith.constant 0 : index
      %c0_27 = arith.constant 0 : index
      %59 = vector.load %arg3[%c0_26, %c0_27] : memref<1x128xf32, #tpu.memory_space<vmem>>, vector<1x128xf32>
      %60 = vector.broadcast %59 : vector<1x128xf32> to vector<16x128xf32>
      %61 = arith.mulf %58, %60 : vector<16x128xf32>
      %c0_28 = arith.constant 0 : index
      %c0_29 = arith.constant 0 : index
      %62 = vector.load %arg4[%c0_28, %c0_29] : memref<1x128xf32, #tpu.memory_space<vmem>>, vector<1x128xf32>
      %63 = vector.broadcast %62 : vector<1x128xf32> to vector<16x128xf32>
      %64 = arith.addf %61, %63 : vector<16x128xf32>
      %c0_30 = arith.constant 0 : index
      %c0_31 = arith.constant 0 : index
      %65 = vector.load %arg11[%c0_30, %c0_31] : memref<16x128xf32, #tpu.memory_space<vmem>>, vector<16x128xf32>
      tpu.vector_store %arg11[%c0_30, %c0_31], %64 {strides = array<i32>} : memref<16x128xf32, #tpu.memory_space<vmem>>, vector<16x128xf32>,
      %c0_32 = arith.constant 0 : index
      %c0_33 = arith.constant 0 : index
      %66 = vector.load %arg8[%c0_32, %c0_33] : memref<1x128xf32, #tpu.memory_space<vmem>>, vector<1x128xf32>
      %67 = vector.broadcast %66 : vector<1x128xf32> to vector<16x128xf32>
      %68 = arith.addf %37, %67 : vector<16x128xf32>
      %c0_34 = arith.constant 0 : index
      %c0_35 = arith.constant 0 : index
      %69 = vector.load %arg10[%c0_34, %c0_35] : memref<16x128xf32, #tpu.memory_space<vmem>>, vector<16x128xf32>
      tpu.vector_store %arg10[%c0_34, %c0_35], %68 {strides = array<i32>} : memref<16x128xf32, #tpu.memory_space<vmem>>, vector<16x128xf32>,
    } else {
    }
    %c0 = arith.constant 0 : index
    %c0_1 = arith.constant 0 : index
    %3 = vector.load %arg11[%c0, %c0_1] : memref<16x128xf32, #tpu.memory_space<vmem>>, vector<16x128xf32>
    %c0_2 = arith.constant 0 : index
    %c0_3 = arith.constant 0 : index
    %4 = vector.load %arg5[%c0_2, %c0_3] : memref<128x256xf32, #tpu.memory_space<vmem>>, vector<128x256xf32>
    %cst = arith.constant dense<0.000000e+00> : vector<16x256xf32>
    %5 = tpu.matmul %3, %4, %cst {dimension_numbers = #tpu.dot_dimension_numbers<[1], [0], [0], [1], [0, 0, 1, 1], [], []>} : vector<16x128xf32>, vector<128x256xf32>, vector<16x256xf32> -> vector<16x256xf32>
    %c0_4 = arith.constant 0 : index
    %c0_5 = arith.constant 0 : index
    %6 = vector.load %arg6[%c0_4, %c0_5] : memref<1x256xf32, #tpu.memory_space<vmem>>, vector<1x256xf32>
    %7 = vector.broadcast %6 : vector<1x256xf32> to vector<16x256xf32>
    %8 = arith.addf %5, %7 : vector<16x256xf32>
    %9 = vector.extract_strided_slice %8 {offsets = [0, 0], sizes = [16, 128], strides = [1, 1]} : vector<16x256xf32> to vector<16x128xf32>
    %10 = vector.extract_strided_slice %8 {offsets = [0, 128], sizes = [16, 128], strides = [1, 1]} : vector<16x256xf32> to vector<16x128xf32>
    %11 = arith.negf %9 : vector<16x128xf32>
    %12 = math.exp %11 : vector<16x128xf32>
    %cst_6 = arith.constant 1.000000e+00 : f32
    %13 = vector.broadcast %cst_6 : f32 to vector<16x128xf32>
    %14 = arith.addf %13, %12 : vector<16x128xf32>
    %15 = arith.divf %13, %14 : vector<16x128xf32>
    %16 = arith.mulf %9, %15 : vector<16x128xf32>
    %17 = arith.negf %10 : vector<16x128xf32>
    %18 = math.exp %17 : vector<16x128xf32>
    %cst_7 = arith.constant 1.000000e+00 : f32
    %19 = vector.broadcast %cst_7 : f32 to vector<16x128xf32>
    %20 = arith.addf %19, %18 : vector<16x128xf32>
    %21 = arith.divf %19, %20 : vector<16x128xf32>
    %22 = arith.mulf %10, %21 : vector<16x128xf32>
    %23 = arith.negf %22 : vector<16x128xf32>
    %24 = math.exp %23 : vector<16x128xf32>
    %cst_8 = arith.constant 1.000000e+00 : f32
    %25 = vector.broadcast %cst_8 : f32 to vector<16x128xf32>
    %26 = arith.addf %25, %24 : vector<16x128xf32>
    %27 = arith.divf %25, %26 : vector<16x128xf32>
    %28 = arith.mulf %16, %27 : vector<16x128xf32>
    %c0_9 = arith.constant 0 : index
    %c0_10 = arith.constant 0 : index
    %29 = vector.load %arg10[%c0_9, %c0_10] : memref<16x128xf32, #tpu.memory_space<vmem>>, vector<16x128xf32>
    %c0_11 = arith.constant 0 : index
    %c0_12 = arith.constant 0 : index
    %30 = vector.load %arg7[%c0_11, %c0_12] : memref<128x128xf32, #tpu.memory_space<vmem>>, vector<128x128xf32>
    %cst_13 = arith.constant dense<0.000000e+00> : vector<16x128xf32>
    %31 = tpu.matmul %28, %30, %cst_13 {dimension_numbers = #tpu.dot_dimension_numbers<[1], [0], [0], [1], [0, 0, 1, 1], [], []>} : vector<16x128xf32>, vector<128x128xf32>, vector<16x128xf32> -> vector<16x128xf32>
    %32 = arith.addf %29, %31 : vector<16x128xf32>
    %c0_14 = arith.constant 0 : index
    %c0_15 = arith.constant 0 : index
    %33 = vector.load %arg10[%c0_14, %c0_15] : memref<16x128xf32, #tpu.memory_space<vmem>>, vector<16x128xf32>
    tpu.vector_store %arg10[%c0_14, %c0_15], %32 {strides = array<i32>} : memref<16x128xf32, #tpu.memory_space<vmem>>, vector<16x128xf32>,
    %c0_i32_16 = arith.constant 0 : i32
    %34 = arith.cmpi eq, %arg1, %c0_i32_16 : i32
    %35 = arith.extui %34 : i1 to i32
    %c0_i32_17 = arith.constant 0 : i32
    %36 = arith.cmpi ne, %35, %c0_i32_17 : i32
    scf.if %36 {
      %c0_18 = arith.constant 0 : index
      %c0_19 = arith.constant 0 : index
      %37 = vector.load %arg10[%c0_18, %c0_19] : memref<16x128xf32, #tpu.memory_space<vmem>>, vector<16x128xf32>
      %c0_20 = arith.constant 0 : index
      %c0_21 = arith.constant 0 : index
      %38 = vector.load %arg9[%c0_20, %c0_21] : memref<16x128xf32, #tpu.memory_space<vmem>>, vector<16x128xf32>
      tpu.vector_store %arg9[%c0_20, %c0_21], %37 {strides = array<i32>} : memref<16x128xf32, #tpu.memory_space<vmem>>, vector<16x128xf32>,
    } else {
    }
    return
  }
  func.func @transform_0(%arg0: i32, %arg1: i32) -> (i32, i32) {
    %c0_i32 = arith.constant 0 : i32
    %c0_i32_0 = arith.constant 0 : i32
    return %arg0, %c0_i32 : i32, i32
  }
  func.func @transform_1(%arg0: i32, %arg1: i32) -> (i32, i32) {
    %c0_i32 = arith.constant 0 : i32
    %c0_i32_0 = arith.constant 0 : i32
    %c0_i32_1 = arith.constant 0 : i32
    return %c0_i32, %c0_i32_0 : i32, i32
  }
  func.func @transform_2(%arg0: i32, %arg1: i32) -> (i32, i32) {
    %c0_i32 = arith.constant 0 : i32
    %c0_i32_0 = arith.constant 0 : i32
    %c0_i32_1 = arith.constant 0 : i32
    return %c0_i32, %c0_i32_0 : i32, i32
  }
  func.func @transform_3(%arg0: i32, %arg1: i32) -> (i32, i32) {
    %c0_i32 = arith.constant 0 : i32
    %c0_i32_0 = arith.constant 0 : i32
    return %c0_i32, %arg1 : i32, i32
  }
  func.func @transform_4(%arg0: i32, %arg1: i32) -> (i32, i32) {
    %c0_i32 = arith.constant 0 : i32
    %c0_i32_0 = arith.constant 0 : i32
    return %c0_i32, %arg1 : i32, i32
  }
  func.func @transform_5(%arg0: i32, %arg1: i32) -> (i32, i32) {
    %c0_i32 = arith.constant 0 : i32
    %c0_i32_0 = arith.constant 0 : i32
    return %arg1, %c0_i32 : i32, i32
  }
  func.func @transform_6(%arg0: i32, %arg1: i32) -> (i32, i32) {
    %c0_i32 = arith.constant 0 : i32
    %c0_i32_0 = arith.constant 0 : i32
    %c0_i32_1 = arith.constant 0 : i32
    return %c0_i32, %c0_i32_0 : i32, i32
  }
  func.func @transform_7(%arg0: i32, %arg1: i32) -> (i32, i32) {
    %c0_i32 = arith.constant 0 : i32
    %c0_i32_0 = arith.constant 0 : i32
    return %arg0, %c0_i32 : i32, i32
  }
}

</mosaic_0001>

<llo_original>
// kernel: tpu_custom_call.1
$region0: #{tpu_custom_call.1}
  #allocation0 [shape = 'u32[]', space=smem, size = 0x4, offset = 0x4, fixed_abs, tag = 'smem constant byte address 0x4 - core index']
  #allocation1 [shape = 'u32[144,128]{1,0:T(1,128)}', space=vmem, size = 0x12000, scoped, tag = 'internal scratch']
  #allocation2 [shape = 'f32[16,128]{1,0:T(8,128)}', space=vmem, size = 0x2000, scoped, tag = 'scratch operand']
  #allocation3 [shape = 'f32[16,128]{1,0:T(8,128)}', space=vmem, size = 0x2000, scoped, tag = 'scratch operand']
  %s0 = inlined_call_operand.hbm [shape: f32[16,128], index: 0, kind: input, shape index: {}]
  %s1 = inlined_call_operand.vmem [shape: f32[1,128], index: 1, kind: input, shape index: {}]
  %s2 = inlined_call_operand.vmem [shape: f32[1,128], index: 2, kind: input, shape index: {}]
  %s3 = inlined_call_operand.hbm [shape: f32[128,256], index: 3, kind: input, shape index: {}]
  %s4 = inlined_call_operand.vmem [shape: f32[1,256], index: 4, kind: input, shape index: {}]
  %s5 = inlined_call_operand.hbm [shape: f32[128,128], index: 5, kind: input, shape index: {}]
  %s6 = inlined_call_operand.vmem [shape: f32[1,128], index: 6, kind: input, shape index: {}]
  %s7 = inlined_call_operand.hbm [shape: f32[16,128], index: 7, kind: output, shape index: {}]
  %s8 = sld [smem:[#allocation0]]
  $region58: #{tpu_custom_call.1} parent=0
    _
  %s10 = ssub.s32 1, %s8
  %s11 = scalar_select 0, %s10, %s8
  $region1: #{tpu_custom_call.1} parent=0
    #allocation4 [shape = 'u8[8192]{0}', space=vmem, size = 0x2000, scoped, tag = 'input window, operand 0, single buffered']
    #allocation5 [shape = 's32[1]{0}', space=sflag, size = 0x4, scoped, tag = 'scoped memory for tpu_custom_call.1']
    #allocation6 [shape = 's32[1]{0}', space=sflag, size = 0x4, scoped, tag = 'scoped memory for tpu_custom_call.1']
    #allocation7 [shape = 'u8[131072]{0}', space=vmem, size = 0x20000, scoped, tag = 'input window, operand 3, single buffered']
    #allocation8 [shape = 's32[1]{0}', space=sflag, size = 0x4, scoped, tag = 'scoped memory for tpu_custom_call.1']
    #allocation9 [shape = 'u8[65536]{0}', space=vmem, size = 0x10000, scoped, tag = 'input window, operand 5, single buffered']
    #allocation10 [shape = 'u8[8192]{0}', space=vmem, size = 0x2000, scoped, tag = 'output window, operand 0, single buffered']
    %12 = vsyncpa [#allocation5], 0
    %13 = vsyncpa [#allocation8], 0
    %14 = vsyncpa [#allocation6], 0
    // Predicated region
    $region2: #{tpu_custom_call.1} parent=1 // pred_check
      _
    $region3: #{tpu_custom_call.1} parent=1 // pred_check_branch
      %16 = sbr.rel (0) target = $region5
    $region4: #{tpu_custom_call.1} parent=1 // pred_region
      %s18 = ssub.s32 256, 256
      %19 = vsyncadd [#allocation5], %s18
      %s20 = sshll.u32 [#allocation4], 4
      %s21 = int_to_ptr.vmem [resolvable:$true] %s20
      %26 = dma.hbm_to_vmem [thread:$0]  %s0, 256, %s21, [#allocation5], 128, 128, 8
    $region5: #{tpu_custom_call.1} parent=1 // pred_fallthru
      _
    // Predicated region
    $region6: #{tpu_custom_call.1} parent=1 // pred_check
      _
    $region7: #{tpu_custom_call.1} parent=1 // pred_check_branch
      %28 = sbr.rel (0) target = $region9
    $region8: #{tpu_custom_call.1} parent=1 // pred_region
      _
    $region9: #{tpu_custom_call.1} parent=1 // pred_fallthru
      _
    // Predicated region
    $region10: #{tpu_custom_call.1} parent=1 // pred_check
      _
    $region11: #{tpu_custom_call.1} parent=1 // pred_check_branch
      %30 = sbr.rel (0) target = $region13
    $region12: #{tpu_custom_call.1} parent=1 // pred_region
      _
    $region13: #{tpu_custom_call.1} parent=1 // pred_fallthru
      _
    // Predicated region
    $region14: #{tpu_custom_call.1} parent=1 // pred_check
      _
    $region15: #{tpu_custom_call.1} parent=1 // pred_check_branch
      %32 = sbr.rel (0) target = $region17
    $region16: #{tpu_custom_call.1} parent=1 // pred_region
      %s34 = ssub.s32 4096, 4096
      %35 = vsyncadd [#allocation8], %s34
      %s36 = sshll.u32 [#allocation7], 4
      %s37 = int_to_ptr.vmem [resolvable:$true] %s36
      %42 = dma.hbm_to_vmem [thread:$0]  %s3, 4096, %s37, [#allocation8], 256, 256, 16
    $region17: #{tpu_custom_call.1} parent=1 // pred_fallthru
      _
    // Predicated region
    $region18: #{tpu_custom_call.1} parent=1 // pred_check
      _
    $region19: #{tpu_custom_call.1} parent=1 // pred_check_branch
      %44 = sbr.rel (0) target = $region21
    $region20: #{tpu_custom_call.1} parent=1 // pred_region
      _
    $region21: #{tpu_custom_call.1} parent=1 // pred_fallthru
      _
    // Predicated region
    $region22: #{tpu_custom_call.1} parent=1 // pred_check
      _
    $region23: #{tpu_custom_call.1} parent=1 // pred_check_branch
      %46 = sbr.rel (0) target = $region25
    $region24: #{tpu_custom_call.1} parent=1 // pred_region
      %s48 = ssub.s32 2048, 2048
      %49 = vsyncadd [#allocation8], %s48
      %s50 = sshll.u32 [#allocation9], 4
      %s51 = int_to_ptr.vmem [resolvable:$true] %s50
      %56 = dma.hbm_to_vmem [thread:$0]  %s5, 2048, %s51, [#allocation8], 128, 128, 8
    $region25: #{tpu_custom_call.1} parent=1 // pred_fallthru
      _
    // Predicated region
    $region26: #{tpu_custom_call.1} parent=1 // pred_check
      _
    $region27: #{tpu_custom_call.1} parent=1 // pred_check_branch
      %58 = sbr.rel (0) target = $region29
    $region28: #{tpu_custom_call.1} parent=1 // pred_region
      _
    $region29: #{tpu_custom_call.1} parent=1 // pred_fallthru
      _
    // Predicated region
    $region30: #{tpu_custom_call.1} parent=1 // pred_check
      _
    $region31: #{tpu_custom_call.1} parent=1 // pred_check_branch
      %60 = sbr.rel (0) target = $region33
    $region32: #{tpu_custom_call.1} parent=1 // pred_region
      %61 = dma.done [#allocation5], 256
    $region33: #{tpu_custom_call.1} parent=1 // pred_fallthru
      _
    // Predicated region
    $region34: #{tpu_custom_call.1} parent=1 // pred_check
      _
    $region35: #{tpu_custom_call.1} parent=1 // pred_check_branch
      %63 = sbr.rel (0) target = $region37
    $region36: #{tpu_custom_call.1} parent=1 // pred_region
      %64 = dma.done [#allocation8], 4096
    $region37: #{tpu_custom_call.1} parent=1 // pred_fallthru
      _
    // Predicated region
    $region38: #{tpu_custom_call.1} parent=1 // pred_check
      _
    $region39: #{tpu_custom_call.1} parent=1 // pred_check_branch
      %66 = sbr.rel (0) target = $region41
    $region40: #{tpu_custom_call.1} parent=1 // pred_region
      %67 = dma.done [#allocation8], 2048
    $region41: #{tpu_custom_call.1} parent=1 // pred_fallthru
      _
    %p68 = scmp.eq.s32.totalorder 0, 0
    // Predicated region
    $region42: #{tpu_custom_call.1} parent=1 // pred_check
      %p69 = pneg %p68
    $region43: #{tpu_custom_call.1} parent=1 // pred_check_branch
      %71 = sbr.rel (%p69) target = $region45
    $region44: #{tpu_custom_call.1} parent=1 // pred_region
      %v72 = vld [vmem:[#allocation4] sm:$0xff]
      %v73 = vld [vmem:[#allocation4 + $0x8] sm:$0xff]
      %74 = vadd.xlane.f32.xlu0 %v72
      %v75 = vpop.xlane.xlu0 %74
      %76 = vadd.xlane.f32.xlu0 %v73
      %v77 = vpop.xlane.xlu0 %76
      %v78 = vmul.f32 %v75, 0.03125
      %v79 = vmul.f32 %v77, 0.03125
      %v80 = vsub.f32 %v72, %v78
      %v81 = vsub.f32 %v73, %v79
      %v82 = vlaneseq
      %v83 = vand.u32 %v82, 127
      %vm84 = vcmp.lt.s32.totalorder %v83, 32
      %v85 = vsel %vm84, %v80, 0.0
      %v86 = vsel %vm84, %v81, 0.0
      %v87 = vmul.f32 %v85, %v85
      %v88 = vmul.f32 %v86, %v86
      %89 = vadd.xlane.f32.xlu0 %v87
      %v90 = vpop.xlane.xlu0 %89
      %91 = vadd.xlane.f32.xlu0 %v88
      %v92 = vpop.xlane.xlu0 %91
      %v93 = vmul.f32 %v90, 0.03125
      %v94 = vmul.f32 %v92, 0.03125
      %v95 = vadd.f32 %v93, 1e-05
      %v96 = vadd.f32 %v94, 1e-05
      %v97 = vrsqrt.pop %v95
      %v98 = vrsqrt.pop %v96
      %v99 = vmul.f32 %v85, %v97
      %v100 = vmul.f32 %v86, %v98
      %v101 = vld [vmem:[%s1] sm:$0x1]
      %v103 = vlaneseq
      %v104 = vshrl.u32 %v103, 7
      %v105 = vsub.s32 0, %v104
      %v106 = vrot.slane %v101, %v105
      %v108 = vmul.f32 %v99, %v106
      %v109 = vmul.f32 %v100, %v106
      %v110 = vld [vmem:[%s2] sm:$0x1]
      %v112 = vlaneseq
      %v113 = vshrl.u32 %v112, 7
      %v114 = vsub.s32 0, %v113
      %v115 = vrot.slane %v110, %v114
      %v117 = vadd.f32 %v108, %v115
      %v118 = vadd.f32 %v109, %v115
      %119 = vst [vmem:[#allocation3] sm:$0xff] %v117
      %120 = vst [vmem:[#allocation3 + $0x8] sm:$0xff] %v118
      %v121 = vld [vmem:[%s6] sm:$0x1]
      %v123 = vlaneseq
      %v124 = vshrl.u32 %v123, 7
      %v125 = vsub.s32 0, %v124
      %v126 = vrot.slane %v121, %v125
      %v128 = vadd.f32 %v72, %v126
      %v129 = vadd.f32 %v73, %v126
      %130 = vst [vmem:[#allocation2] sm:$0xff] %v128
      %131 = vst [vmem:[#allocation2 + $0x8] sm:$0xff] %v129
    $region45: #{tpu_custom_call.1} parent=1 // pred_fallthru
      _
    %v132 = vld [vmem:[#allocation3] sm:$0xff]
    %v133 = vld [vmem:[#allocation3 + $0x8] sm:$0xff]
    %v134 = vld [vmem:[#allocation7] sm:$0xff]
    %v135 = vld [vmem:[#allocation7 + $0x8] sm:$0xff]
    %v136 = vld [vmem:[#allocation7 + $0x10] sm:$0xff]
    %v137 = vld [vmem:[#allocation7 + $0x18] sm:$0xff]
    %v138 = vld [vmem:[#allocation7 + $0x20] sm:$0xff]
    %v139 = vld [vmem:[#allocation7 + $0x28] sm:$0xff]
    %v140 = vld [vmem:[#allocation7 + $0x30] sm:$0xff]
    %v141 = vld [vmem:[#allocation7 + $0x38] sm:$0xff]
    %v142 = vld [vmem:[#allocation7 + $0x40] sm:$0xff]
    %v143 = vld [vmem:[#allocation7 + $0x48] sm:$0xff]
    %v144 = vld [vmem:[#allocation7 + $0x50] sm:$0xff]
    %v145 = vld [vmem:[#allocation7 + $0x58] sm:$0xff]
    %v146 = vld [vmem:[#allocation7 + $0x60] sm:$0xff]
    %v147 = vld [vmem:[#allocation7 + $0x68] sm:$0xff]
    %v148 = vld [vmem:[#allocation7 + $0x70] sm:$0xff]
    %v149 = vld [vmem:[#allocation7 + $0x78] sm:$0xff]
    %v150 = vld [vmem:[#allocation7 + $0x80] sm:$0xff]
    %v151 = vld [vmem:[#allocation7 + $0x88] sm:$0xff]
    %v152 = vld [vmem:[#allocation7 + $0x90] sm:$0xff]
    %v153 = vld [vmem:[#allocation7 + $0x98] sm:$0xff]
    %v154 = vld [vmem:[#allocation7 + $0xa0] sm:$0xff]
    %v155 = vld [vmem:[#allocation7 + $0xa8] sm:$0xff]
    %v156 = vld [vmem:[#allocation7 + $0xb0] sm:$0xff]
    %v157 = vld [vmem:[#allocation7 + $0xb8] sm:$0xff]
    %v158 = vld [vmem:[#allocation7 + $0xc0] sm:$0xff]
    %v159 = vld [vmem:[#allocation7 + $0xc8] sm:$0xff]
    %v160 = vld [vmem:[#allocation7 + $0xd0] sm:$0xff]
    %v161 = vld [vmem:[#allocation7 + $0xd8] sm:$0xff]
    %v162 = vld [vmem:[#allocation7 + $0xe0] sm:$0xff]
    %v163 = vld [vmem:[#allocation7 + $0xe8] sm:$0xff]
    %v164 = vld [vmem:[#allocation7 + $0xf0] sm:$0xff]
    %v165 = vld [vmem:[#allocation7 + $0xf8] sm:$0xff]
    %v166 = vld [vmem:[%s4] sm:$0x3]
    %v168 = vlaneseq
    %v169 = vshrl.u32 %v168, 7
    %v170 = vsub.s32 0, %v169
    %v171 = vrot.slane %v166, %v170
    %v172 = vlaneseq
    %v173 = vshrl.u32 %v172, 7
    %v174 = vsub.s32 1, %v173
    %v175 = vrot.slane %v166, %v174
    %178 = vmatprep.subr.mxu0 %v135
    %179 = vmatpush1.msra.mxu0 %v134
    %180 = vmatprep.subr.mxu0 %v137
    %181 = vmatpush1.msra.mxu0 %v136
    %182 = vmatprep.subr.mxu0 %v139
    %183 = vmatpush1.msra.mxu0 %v138
    %184 = vmatprep.subr.mxu0 %v141
    %185 = vmatpush1.msra.mxu0 %v140
    %186 = vmatprep.subr.mxu0 %v143
    %187 = vmatpush1.msra.mxu0 %v142
    %188 = vmatprep.subr.mxu0 %v145
    %189 = vmatpush1.msra.mxu0 %v144
    %190 = vmatprep.subr.mxu0 %v147
    %191 = vmatpush1.msra.mxu0 %v146
    %192 = vmatprep.subr.mxu0 %v149
    %193 = vmatpush1.msra.mxu0 %v148
    %194 = vmatprep.subr.mxu0 %v151
    %195 = vmatpush1.msra.mxu0 %v150
    %196 = vmatprep.subr.mxu0 %v153
    %197 = vmatpush1.msra.mxu0 %v152
    %198 = vmatprep.subr.mxu0 %v155
    %199 = vmatpush1.msra.mxu0 %v154
    %200 = vmatprep.subr.mxu0 %v157
    %201 = vmatpush1.msra.mxu0 %v156
    %202 = vmatprep.subr.mxu0 %v159
    %203 = vmatpush1.msra.mxu0 %v158
    %204 = vmatprep.subr.mxu0 %v161
    %205 = vmatpush1.msra.mxu0 %v160
    %206 = vmatprep.subr.mxu0 %v163
    %207 = vmatpush1.msra.mxu0 %v162
    %208 = vmatprep.subr.mxu0 %v165
    %209 = vmatpush1.msra.mxu0 %v164
    %210 = vmatprep.subr.mxu0 0.0
    %211 = vmatpush1.msra.mxu0 0.0
    %212 = vmatprep.subr.mxu0 0.0
    %213 = vmatpush1.msra.mxu0 0.0
    %214 = vmatprep.subr.mxu0 0.0
    %215 = vmatpush1.msra.mxu0 0.0
    %216 = vmatprep.subr.mxu0 0.0
    %217 = vmatpush1.msra.mxu0 0.0
    %218 = vmatprep.subr.mxu0 0.0
    %219 = vmatpush1.msra.mxu0 0.0
    %220 = vmatprep.subr.mxu0 0.0
    %221 = vmatpush1.msra.mxu0 0.0
    %222 = vmatprep.subr.mxu0 0.0
    %223 = vmatpush1.msra.mxu0 0.0
    %224 = vmatprep.subr.mxu0 0.0
    %225 = vmatpush1.msra.mxu0 0.0
    %226 = vmatprep.subr.mxu0 0.0
    %227 = vmatpush1.msra.mxu0 0.0
    %228 = vmatprep.subr.mxu0 0.0
    %229 = vmatpush1.msra.mxu0 0.0
    %230 = vmatprep.subr.mxu0 0.0
    %231 = vmatpush1.msra.mxu0 0.0
    %232 = vmatprep.subr.mxu0 0.0
    %233 = vmatpush1.msra.mxu0 0.0
    %234 = vmatprep.subr.mxu0 0.0
    %235 = vmatpush1.msra.mxu0 0.0
    %236 = vmatprep.subr.mxu0 0.0
    %237 = vmatpush1.msra.mxu0 0.0
    %238 = vmatprep.subr.mxu0 0.0
    %239 = vmatpush1.msra.mxu0 0.0
    %240 = vmatprep.subr.mxu0 0.0
    %241 = vmatpush1.msra.mxu0 0.0
    %242 = vmatprep.mubr.f32.mxu0 0.0
    %243 = vmatmul.mubr.f32.gmra.mrb[0].mxu0 %v132
    %v244 = vpop.f32.mrb[0].mxu0
    %v245 = vadd.f32 %v171, %v244
    %v246 = vpop.f32.mrb[0].mxu0
    %v247 = vadd.f32 %v175, %v246
    %248 = vmatprep.mubr.f32.mxu0 0.0
    %249 = vmatmul.mubr.f32.gmra.mrb[0].mxu0 %v133
    %v250 = vpop.f32.mrb[0].mxu0
    %v251 = vadd.f32 %v171, %v250
    %v252 = vpop.f32.mrb[0].mxu0
    %v253 = vadd.f32 %v175, %v252
    %254 = vdwg.mxu0
    %v255 = vxor.u32 %v245, 2147483648
    %v256 = vxor.u32 %v251, 2147483648
    %v257 = vmul.f32 %v255, 1.442695
    %v258 = vpow.pop %v257
    %v259 = vmul.f32 %v256, 1.442695
    %v260 = vpow.pop %v259
    %v261 = vadd.f32 %v258, 1.0
    %v262 = vadd.f32 %v260, 1.0
    %v263 = vrcp.pop %v261
    %v264 = vmul.f32 1.0, %v263
    %v265 = vrcp.pop %v262
    %v266 = vmul.f32 1.0, %v265
    %v267 = vmul.f32 %v245, %v264
    %v268 = vmul.f32 %v251, %v266
    %v269 = vxor.u32 %v247, 2147483648
    %v270 = vxor.u32 %v253, 2147483648
    %v271 = vmul.f32 %v269, 1.442695
    %v272 = vpow.pop %v271
    %v273 = vmul.f32 %v270, 1.442695
    %v274 = vpow.pop %v273
    %v275 = vadd.f32 %v272, 1.0
    %v276 = vadd.f32 %v274, 1.0
    %v277 = vrcp.pop %v275
    %v278 = vmul.f32 1.0, %v277
    %v279 = vrcp.pop %v276
    %v280 = vmul.f32 1.0, %v279
    %v281 = vmul.f32 %v247, %v278
    %v282 = vmul.f32 %v253, %v280
    %v283 = vxor.u32 %v281, 2147483648
    %v284 = vxor.u32 %v282, 2147483648
    %v285 = vmul.f32 %v283, 1.442695
    %v286 = vpow.pop %v285
    %v287 = vmul.f32 %v284, 1.442695
    %v288 = vpow.pop %v287
    %v289 = vadd.f32 %v286, 1.0
    %v290 = vadd.f32 %v288, 1.0
    %v291 = vrcp.pop %v289
    %v292 = vmul.f32 1.0, %v291
    %v293 = vrcp.pop %v290
    %v294 = vmul.f32 1.0, %v293
    %v295 = vmul.f32 %v267, %v292
    %v296 = vmul.f32 %v268, %v294
    %v297 = vld [vmem:[#allocation2] sm:$0xff]
    %v298 = vld [vmem:[#allocation2 + $0x8] sm:$0xff]
    %v299 = vld [vmem:[#allocation9] sm:$0xff]
    %v300 = vld [vmem:[#allocation9 + $0x8] sm:$0xff]
    %v301 = vld [vmem:[#allocation9 + $0x10] sm:$0xff]
    %v302 = vld [vmem:[#allocation9 + $0x18] sm:$0xff]
    %v303 = vld [vmem:[#allocation9 + $0x20] sm:$0xff]
    %v304 = vld [vmem:[#allocation9 + $0x28] sm:$0xff]
    %v305 = vld [vmem:[#allocation9 + $0x30] sm:$0xff]
    %v306 = vld [vmem:[#allocation9 + $0x38] sm:$0xff]
    %v307 = vld [vmem:[#allocation9 + $0x40] sm:$0xff]
    %v308 = vld [vmem:[#allocation9 + $0x48] sm:$0xff]
    %v309 = vld [vmem:[#allocation9 + $0x50] sm:$0xff]
    %v310 = vld [vmem:[#allocation9 + $0x58] sm:$0xff]
    %v311 = vld [vmem:[#allocation9 + $0x60] sm:$0xff]
    %v312 = vld [vmem:[#allocation9 + $0x68] sm:$0xff]
    %v313 = vld [vmem:[#allocation9 + $0x70] sm:$0xff]
    %v314 = vld [vmem:[#allocation9 + $0x78] sm:$0xff]
    %315 = vmatprep.subr.mxu0 0.0
    %316 = vmatpush1.msra.mxu0 %v299
    %317 = vmatprep.subr.mxu0 0.0
    %318 = vmatpush1.msra.mxu0 %v300
    %319 = vmatprep.subr.mxu0 0.0
    %320 = vmatpush1.msra.mxu0 %v301
    %321 = vmatprep.subr.mxu0 0.0
    %322 = vmatpush1.msra.mxu0 %v302
    %323 = vmatprep.subr.mxu0 0.0
    %324 = vmatpush1.msra.mxu0 %v303
    %325 = vmatprep.subr.mxu0 0.0
    %326 = vmatpush1.msra.mxu0 %v304
    %327 = vmatprep.subr.mxu0 0.0
    %328 = vmatpush1.msra.mxu0 %v305
    %329 = vmatprep.subr.mxu0 0.0
    %330 = vmatpush1.msra.mxu0 %v306
    %331 = vmatprep.subr.mxu0 0.0
    %332 = vmatpush1.msra.mxu0 %v307
    %333 = vmatprep.subr.mxu0 0.0
    %334 = vmatpush1.msra.mxu0 %v308
    %335 = vmatprep.subr.mxu0 0.0
    %336 = vmatpush1.msra.mxu0 %v309
    %337 = vmatprep.subr.mxu0 0.0
    %338 = vmatpush1.msra.mxu0 %v310
    %339 = vmatprep.subr.mxu0 0.0
    %340 = vmatpush1.msra.mxu0 %v311
    %341 = vmatprep.subr.mxu0 0.0
    %342 = vmatpush1.msra.mxu0 %v312
    %343 = vmatprep.subr.mxu0 0.0
    %344 = vmatpush1.msra.mxu0 %v313
    %345 = vmatprep.subr.mxu0 0.0
    %346 = vmatpush1.msra.mxu0 %v314
    %347 = vmatprep.subr.mxu0 0.0
    %348 = vmatpush1.msra.mxu0 0.0
    %349 = vmatprep.subr.mxu0 0.0
    %350 = vmatpush1.msra.mxu0 0.0
    %351 = vmatprep.subr.mxu0 0.0
    %352 = vmatpush1.msra.mxu0 0.0
    %353 = vmatprep.subr.mxu0 0.0
    %354 = vmatpush1.msra.mxu0 0.0
    %355 = vmatprep.subr.mxu0 0.0
    %356 = vmatpush1.msra.mxu0 0.0
    %357 = vmatprep.subr.mxu0 0.0
    %358 = vmatpush1.msra.mxu0 0.0
    %359 = vmatprep.subr.mxu0 0.0
    %360 = vmatpush1.msra.mxu0 0.0
    %361 = vmatprep.subr.mxu0 0.0
    %362 = vmatpush1.msra.mxu0 0.0
    %363 = vmatprep.subr.mxu0 0.0
    %364 = vmatpush1.msra.mxu0 0.0
    %365 = vmatprep.subr.mxu0 0.0
    %366 = vmatpush1.msra.mxu0 0.0
    %367 = vmatprep.subr.mxu0 0.0
    %368 = vmatpush1.msra.mxu0 0.0
    %369 = vmatprep.subr.mxu0 0.0
    %370 = vmatpush1.msra.mxu0 0.0
    %371 = vmatprep.subr.mxu0 0.0
    %372 = vmatpush1.msra.mxu0 0.0
    %373 = vmatprep.subr.mxu0 0.0
    %374 = vmatpush1.msra.mxu0 0.0
    %375 = vmatprep.subr.mxu0 0.0
    %376 = vmatpush1.msra.mxu0 0.0
    %377 = vmatprep.subr.mxu0 0.0
    %378 = vmatpush1.msra.mxu0 0.0
    %379 = vmatprep.mubr.f32.mxu0 0.0
    %380 = vmatmul.mubr.f32.gmra.mrb[0].mxu0 %v295
    %v381 = vpop.f32.mrb[0].mxu0
    %v382 = vadd.f32 0.0, %v381
    %v383 = vpop.f32.mrb[0].mxu0
    %384 = vmatprep.mubr.f32.mxu0 0.0
    %385 = vmatmul.mubr.f32.gmra.mrb[0].mxu0 %v296
    %v386 = vpop.f32.mrb[0].mxu0
    %v387 = vadd.f32 0.0, %v386
    %v388 = vpop.f32.mrb[0].mxu0
    %389 = vdwg.mxu0
    %v390 = vadd.f32 %v297, %v382
    %v391 = vadd.f32 %v298, %v387
    %392 = vst [vmem:[#allocation2] sm:$0xff] %v390
    %393 = vst [vmem:[#allocation2 + $0x8] sm:$0xff] %v391
    // Predicated region
    $region46: #{tpu_custom_call.1} parent=1 // pred_check
      %p394 = pneg %p68
    $region47: #{tpu_custom_call.1} parent=1 // pred_check_branch
      %396 = sbr.rel (%p394) target = $region49
    $region48: #{tpu_custom_call.1} parent=1 // pred_region
      %v397 = vld [vmem:[#allocation2] sm:$0xff]
      %v398 = vld [vmem:[#allocation2 + $0x8] sm:$0xff]
      %399 = vst [vmem:[#allocation10] sm:$0xff] %v397
      %400 = vst [vmem:[#allocation10 + $0x8] sm:$0xff] %v398
    $region49: #{tpu_custom_call.1} parent=1 // pred_fallthru
      _
    // Predicated region
    $region50: #{tpu_custom_call.1} parent=1 // pred_check
      _
    $region51: #{tpu_custom_call.1} parent=1 // pred_check_branch
      %402 = sbr.rel (0) target = $region53
    $region52: #{tpu_custom_call.1} parent=1 // pred_region
      %s404 = ssub.s32 256, 256
      %405 = vsyncadd [#allocation6], %s404
      %s406 = sshll.u32 [#allocation10], 4
      %s407 = int_to_ptr.vmem [resolvable:$true] %s406
      %412 = dma.vmem_to_hbm [thread:$0]  %s407, 256, %s7, [#allocation6], 128, 128, 8
    $region53: #{tpu_custom_call.1} parent=1 // pred_fallthru
      _
    // Predicated region
    $region54: #{tpu_custom_call.1} parent=1 // pred_check
      _
    $region55: #{tpu_custom_call.1} parent=1 // pred_check_branch
      %414 = sbr.rel (0) target = $region57
    $region56: #{tpu_custom_call.1} parent=1 // pred_region
      %415 = dma.done [#allocation6], 256
    $region57: #{tpu_custom_call.1} parent=1 // pred_fallthru
      _
    %416 = vsyncpa [#allocation5], 1
    %417 = vsyncpa [#allocation8], 1
    %418 = vsyncpa [#allocation6], 1

</llo_original>
